<compile_context>
chip_gen: v7x
topology: tpu7x:2x2x1
jax: 0.10.0
libtpu: 0.0.40
codegen_flags: <defaults>
</compile_context>

<pallas_src>
import jax
import jax.numpy as jnp
from jax import lax
from jax.experimental import pallas as pl
from jax.experimental.pallas import tpu as pltpu


def box_encoder_kernel(x_ref, w_ref, b_ref, o_ref):
    # x_ref: (tile_n, boxSize)       -- natural row-major layout (no transpose)
    # w_ref: (featureSize, boxSize)  -- PyTorch nn.Linear.weight layout, resident
    # b_ref: (1, featureSize)        -- resident
    # o_ref: (tile_n, featureSize)   -- written directly in the module's layout
    acc = lax.dot_general(
        x_ref[...], w_ref[...],
        dimension_numbers=(((1,), (1,)), ((), ())),   # x @ w.T (contract boxSize)
        preferred_element_type=jnp.float32)
    # f32 bias add + f32 tanh (EUP); cast only at the store.
    o_ref[...] = jnp.tanh(acc + b_ref[...]).astype(o_ref.dtype)


def box_encoder(x, w, b, *, tile_n=2048, out_dtype=None):
    """Forward pass of BoxEncoder: tanh(x @ w.T + b).

    x: (N, boxSize) float32
    w: (featureSize, boxSize)  -- same layout as nn.Linear.weight
    b: (featureSize,)
    Returns (N, featureSize) in `out_dtype` (defaults to x.dtype).
    For very small N the fixed grid/dispatch overhead dominates; a fused XLA
    `jnp.tanh(x @ w.T + b)` is equally good there — the kernel pays off once
    there are many full tiles to pipeline.
    """
    N, box_size = x.shape
    feature_size = w.shape[0]
    out_dtype = out_dtype or x.dtype

    # tile_n: multiple of 8 (sublane granule); clamp so tiny N doesn't
    # over-allocate a huge block.  No padding copy of x is ever made — the
    # final block may overhang N and Pallas masks the out-of-bounds writes.
    tile_n = max(8, (int(tile_n) // 8) * 8)
    tile_n = min(tile_n, pl.cdiv(N, 8) * 8)
    grid = (pl.cdiv(N, tile_n),)

    b2d = b.reshape(1, feature_size).astype(jnp.float32)

    return pl.pallas_call(
        box_encoder_kernel,
        out_shape=jax.ShapeDtypeStruct((N, feature_size), out_dtype),
        grid_spec=pltpu.PrefetchScalarGridSpec(
            num_scalar_prefetch=0,
            grid=grid,
            in_specs=[
                # x: march along N; boxSize is the full (tiny) last dim.
                pl.BlockSpec((tile_n, box_size), lambda i: (i, 0)),
                # Weight and bias are tiny and resident every step.
                pl.BlockSpec((feature_size, box_size), lambda i: (0, 0)),
                pl.BlockSpec((1, feature_size), lambda i: (0, 0)),
            ],
            out_specs=pl.BlockSpec((tile_n, feature_size), lambda i: (i, 0)),
        ),
        compiler_params=pltpu.CompilerParams(
            # Independent N-tiles: lets Mosaic pipeline DMAs and shard the
            # grid across both TensorCores on v7x.
            dimension_semantics=("parallel",),
        ),
    )(x, w, b2d)


if __name__ == "__main__":
    # Shapes implied by the module: boxes_in is (N, boxSize); Linear(boxSize, featureSize).
    box_size = 12
    feature_size = 32

    key = jax.random.PRNGKey(0)
    kx, kw, kb = jax.random.split(key, 3)

    # Deterministic init mimicking nn.Linear default: U(-1/sqrt(boxSize), 1/sqrt(boxSize)).
    bound = 1.0 / (box_size ** 0.5)
    w = jax.random.uniform(kw, (feature_size, box_size), jnp.float32, -bound, bound)
    b = jax.random.uniform(kb, (feature_size,), jnp.float32, -bound, bound)

    # Multi-step grid (tile_n=256 -> 4 steps) so the pipeline actually runs.
    N = 1024
    boxes_in = jax.random.normal(kx, (N, box_size), jnp.float32)
    out = jax.block_until_ready(box_encoder(boxes_in, w, b, tile_n=256))
    ref = jnp.tanh(boxes_in @ w.T + b)
    assert out.shape == (N, feature_size)
    assert jnp.allclose(out, ref, atol=2e-5, rtol=2e-5)

    # Ragged N (partial final block, no padding copy).
    ragged_in = jax.random.normal(kx, (300, box_size), jnp.float32)
    ragged_out = jax.block_until_ready(box_encoder(ragged_in, w, b))
    ragged_ref = jnp.tanh(ragged_in @ w.T + b)
    assert ragged_out.shape == (300, feature_size)
    assert jnp.allclose(ragged_out, ragged_ref, atol=2e-5, rtol=2e-5)

    # Tiny batch.
    small_in = jax.random.normal(kx, (8, box_size), jnp.float32)
    small_out = jax.block_until_ready(box_encoder(small_in, w, b))
    small_ref = jnp.tanh(small_in @ w.T + b)
    assert small_out.shape == (8, feature_size)
    assert jnp.allclose(small_out, small_ref, atol=2e-5, rtol=2e-5)

    # bf16-output path (f32 accumulate/tanh, cast only at the store): ~40% less
    # HBM traffic.  Wider tolerance against the f32 reference for the cast.
    bf16_out = jax.block_until_ready(
        box_encoder(boxes_in, w, b, tile_n=256, out_dtype=jnp.bfloat16))
    assert bf16_out.dtype == jnp.bfloat16
    assert jnp.allclose(bf16_out.astype(jnp.float32), ref, atol=2e-2, rtol=2e-2)

    print("KERNEL_OK")
</pallas_src>

<mosaic_0001>
module attributes {stable_mosaic.version = 11 : i64} {
  func.func @box_encoder_kernel(%arg0: i32, %arg1: memref<256x12xf32, #tpu.memory_space<vmem>>, %arg2: memref<32x12xf32, #tpu.memory_space<vmem>>, %arg3: memref<1x32xf32, #tpu.memory_space<vmem>>, %arg4: memref<256x32xf32, #tpu.memory_space<vmem>>) attributes {dimension_semantics = [#tpu.dimension_semantics<parallel>], iteration_bounds = array<i64: 4>, scalar_prefetch = 0 : i64, scratch_operands = 0 : i64, tpu.core_type = #tpu.core_type<tc>, window_params = [{transform_indices = @transform_0, window_bounds = array<i64: 256, 12>}, {pipeline_mode = #tpu.pipeline_mode<synchronous>, transform_indices = @transform_1, window_bounds = array<i64: 32, 12>}, {pipeline_mode = #tpu.pipeline_mode<synchronous>, transform_indices = @transform_2, window_bounds = array<i64: 1, 32>}, {transform_indices = @transform_3, window_bounds = array<i64: 256, 32>}]} {
    %c0 = arith.constant 0 : index
    %c0_0 = arith.constant 0 : index
    %0 = vector.load %arg1[%c0, %c0_0] : memref<256x12xf32, #tpu.memory_space<vmem>>, vector<256x12xf32>
    %c0_1 = arith.constant 0 : index
    %c0_2 = arith.constant 0 : index
    %1 = vector.load %arg2[%c0_1, %c0_2] : memref<32x12xf32, #tpu.memory_space<vmem>>, vector<32x12xf32>
    %cst = arith.constant dense<0.000000e+00> : vector<256x32xf32>
    %2 = tpu.matmul %0, %1, %cst {dimension_numbers = #tpu.dot_dimension_numbers<[1], [1], [0], [0], [0, 0, 1, 0], [], []>} : vector<256x12xf32>, vector<32x12xf32>, vector<256x32xf32> -> vector<256x32xf32>
    %c0_3 = arith.constant 0 : index
    %c0_4 = arith.constant 0 : index
    %3 = vector.load %arg3[%c0_3, %c0_4] : memref<1x32xf32, #tpu.memory_space<vmem>>, vector<1x32xf32>
    %4 = vector.broadcast %3 : vector<1x32xf32> to vector<256x32xf32>
    %5 = arith.addf %2, %4 : vector<256x32xf32>
    %6 = math.tanh %5 : vector<256x32xf32>
    %c0_5 = arith.constant 0 : index
    %c0_6 = arith.constant 0 : index
    %7 = vector.load %arg4[%c0_5, %c0_6] : memref<256x32xf32, #tpu.memory_space<vmem>>, vector<256x32xf32>
    tpu.vector_store %arg4[%c0_5, %c0_6], %6 {strides = array<i32>} : memref<256x32xf32, #tpu.memory_space<vmem>>, vector<256x32xf32>,
    return
  }
  func.func @transform_0(%arg0: i32) -> (i32, i32) {
    %c0_i32 = arith.constant 0 : i32
    %c0_i32_0 = arith.constant 0 : i32
    return %arg0, %c0_i32 : i32, i32
  }
  func.func @transform_1(%arg0: i32) -> (i32, i32) {
    %c0_i32 = arith.constant 0 : i32
    %c0_i32_0 = arith.constant 0 : i32
    %c0_i32_1 = arith.constant 0 : i32
    return %c0_i32, %c0_i32_0 : i32, i32
  }
  func.func @transform_2(%arg0: i32) -> (i32, i32) {
    %c0_i32 = arith.constant 0 : i32
    %c0_i32_0 = arith.constant 0 : i32
    %c0_i32_1 = arith.constant 0 : i32
    return %c0_i32, %c0_i32_0 : i32, i32
  }
  func.func @transform_3(%arg0: i32) -> (i32, i32) {
    %c0_i32 = arith.constant 0 : i32
    %c0_i32_0 = arith.constant 0 : i32
    return %arg0, %c0_i32 : i32, i32
  }
}

</mosaic_0001>

<llo_original>
// kernel: tpu_custom_call.1
$region0: #{tpu_custom_call.1}
  #allocation0 [shape = 'u32[]', space=smem, size = 0x4, offset = 0x4, fixed_abs, tag = 'smem constant byte address 0x4 - core index']
  #allocation1 [shape = 'u32[144,128]{1,0:T(1,128)}', space=vmem, size = 0x12000, scoped, tag = 'internal scratch']
  %s0 = inlined_call_operand.vmem [shape: f32[1024,12], index: 0, kind: input, shape index: {}]
  %s1 = inlined_call_operand.vmem [shape: f32[32,12], index: 1, kind: input, shape index: {}]
  %s2 = inlined_call_operand.vmem [shape: f32[1,32], index: 2, kind: input, shape index: {}]
  %s3 = inlined_call_operand.vmem [shape: f32[1024,32], index: 3, kind: output, shape index: {}]
  %s4 = sld [smem:[#allocation0]]
  $region45: #{tpu_custom_call.1} parent=0
    _
  %s6 = ssub.s32 1, %s4
  %s7 = scalar_select 0, %s6, %s4
  loop: start=0, step=1, limit=6
  $region2: #{tpu_custom_call.1} parent=0 // loop_pre_header
    _
  $region3: #{tpu_custom_call.1} parent=0 // loop_header
    %s9 = sphi 0, %s13
    %p10 = scmp.ge.s32.totalorder %s9, 6
    %s19 = sphi 0, %s21
    %s22 = sphi 0, %s19
    %s23 = sphi 0, %s22
    %s39 = sphi 0, %s23
    %s43 = sphi 0, %s43
    %s45 = sphi 0, %s43
    %s46 = sphi 0, %s45
    %s60 = sphi 0, %s46
    %s64 = sphi 0, %s64
    %s66 = sphi 0, %s64
    %s67 = sphi 0, %s66
    %s81 = sphi 0, %s67
    %s87 = sphi 0, %s89
    %s90 = sphi 0, %s87
    %s91 = sphi 0, %s90
    %s107 = sphi 0, %s91
  $region4: #{tpu_custom_call.1} parent=0 // loop_header_branch
    %12 = sbr.rel (%p10) target = $region8
  $region5: #{tpu_custom_call.1} parent=0 // loop_body
    %s14 = ssub.s32 %s9, 1
    %s15 = ssub.s32 %s9, 2
    %s16 = sadd.s32 %s9, 1
    %s17 = ssub.s32 %s9, %s16
    %p18 = scmp.eq.s32.totalorder %s17, 0
    %s20 = sadd.s32 %s19, 1
    %s21 = scalar_select %p18, %s19, %s20
    %p24 = pneg %p18
    %p25 = scmp.eq.s32.totalorder %s9, 3
    %p26 = por %p24, %p25
    %p27 = scmp.ne.s32.totalorder %s19, %s22
    %p28 = scmp.eq.s32.totalorder %s9, 0
    %p29 = por %p27, %p28
    %p30 = scmp.ne.s32.totalorder %s19, %s22
    %p31 = scmp.eq.s32.totalorder %s14, 3
    %p32 = por %p30, %p31
    %p33 = scmp.ne.s32.totalorder %s22, %s23
    %p34 = scmp.eq.s32.totalorder %s14, 0
    %p35 = por %p33, %p34
    %p36 = scmp.ne.s32.totalorder %s22, %s23
    %p37 = scmp.eq.s32.totalorder %s15, 3
    %p38 = por %p36, %p37
    %p40 = scmp.ne.s32.totalorder %s23, %s39
    %p41 = scmp.eq.s32.totalorder %s15, 0
    %p42 = por %p40, %p41
    %s44 = sadd.s32 %s43, 1
    %p47 = scmp.eq.s32.totalorder %s9, 3
    %p48 = scmp.ne.s32.totalorder %s43, %s45
    %p49 = scmp.eq.s32.totalorder %s9, 0
    %p50 = por %p48, %p49
    %p51 = scmp.ne.s32.totalorder %s43, %s45
    %p52 = scmp.eq.s32.totalorder %s14, 3
    %p53 = por %p51, %p52
    %p54 = scmp.ne.s32.totalorder %s45, %s46
    %p55 = scmp.eq.s32.totalorder %s14, 0
    %p56 = por %p54, %p55
    %p57 = scmp.ne.s32.totalorder %s45, %s46
    %p58 = scmp.eq.s32.totalorder %s15, 3
    %p59 = por %p57, %p58
    %p61 = scmp.ne.s32.totalorder %s46, %s60
    %p62 = scmp.eq.s32.totalorder %s15, 0
    %p63 = por %p61, %p62
    %s65 = sadd.s32 %s64, 1
    %p68 = scmp.eq.s32.totalorder %s9, 3
    %p69 = scmp.ne.s32.totalorder %s64, %s66
    %p70 = scmp.eq.s32.totalorder %s9, 0
    %p71 = por %p69, %p70
    %p72 = scmp.ne.s32.totalorder %s64, %s66
    %p73 = scmp.eq.s32.totalorder %s14, 3
    %p74 = por %p72, %p73
    %p75 = scmp.ne.s32.totalorder %s66, %s67
    %p76 = scmp.eq.s32.totalorder %s14, 0
    %p77 = por %p75, %p76
    %p78 = scmp.ne.s32.totalorder %s66, %s67
    %p79 = scmp.eq.s32.totalorder %s15, 3
    %p80 = por %p78, %p79
    %p82 = scmp.ne.s32.totalorder %s67, %s81
    %p83 = scmp.eq.s32.totalorder %s15, 0
    %p84 = por %p82, %p83
    %s85 = ssub.s32 %s9, %s16
    %p86 = scmp.eq.s32.totalorder %s85, 0
    %s88 = sadd.s32 %s87, 1
    %s89 = scalar_select %p86, %s87, %s88
    %p92 = pneg %p86
    %p93 = scmp.eq.s32.totalorder %s9, 3
    %p94 = por %p92, %p93
    %p95 = scmp.ne.s32.totalorder %s87, %s90
    %p96 = scmp.eq.s32.totalorder %s9, 0
    %p97 = por %p95, %p96
    %p98 = scmp.ne.s32.totalorder %s87, %s90
    %p99 = scmp.eq.s32.totalorder %s14, 3
    %p100 = por %p98, %p99
    %p101 = scmp.ne.s32.totalorder %s90, %s91
    %p102 = scmp.eq.s32.totalorder %s14, 0
    %p103 = por %p101, %p102
    %p104 = scmp.ne.s32.totalorder %s90, %s91
    %p105 = scmp.eq.s32.totalorder %s15, 3
    %p106 = por %p104, %p105
    %p108 = scmp.ne.s32.totalorder %s91, %s107
    %p109 = scmp.eq.s32.totalorder %s15, 0
    %p110 = por %p108, %p109
    %p111 = scmp.le.s32.totalorder 1, %s9
    %p112 = scmp.lt.s32.totalorder %s9, 5
    %p113 = pnand %p111, %p112
    %p114 = pneg %p113
    // Predicated region
    $region9: #{tpu_custom_call.1} parent=5 // pred_check
      _
    $region10: #{tpu_custom_call.1} parent=5 // pred_check_branch
      %116 = sbr.rel (%p113) target = $region12
    $region11: #{tpu_custom_call.1} parent=5 // pred_region
      %s117 = ssub.s32 %s9, 1
      // Predicated region
      $region13: #{tpu_custom_call.1} parent=11 // pred_check
        %p118 = pneg %p56
      $region14: #{tpu_custom_call.1} parent=11 // pred_check_branch
        %120 = sbr.rel (%p118) target = $region16
      $region15: #{tpu_custom_call.1} parent=11 // pred_region
        _
      $region16: #{tpu_custom_call.1} parent=11 // pred_fallthru
        _
      // Predicated region
      $region17: #{tpu_custom_call.1} parent=11 // pred_check
        %p121 = pneg %p77
      $region18: #{tpu_custom_call.1} parent=11 // pred_check_branch
        %123 = sbr.rel (%p121) target = $region20
      $region19: #{tpu_custom_call.1} parent=11 // pred_region
        _
      $region20: #{tpu_custom_call.1} parent=11 // pred_fallthru
        _
    $region12: #{tpu_custom_call.1} parent=5 // pred_fallthru
      _
    %p124 = scmp.lt.s32.totalorder %s9, 4
    // Predicated region
    $region21: #{tpu_custom_call.1} parent=5 // pred_check
      %p125 = pneg %p124
    $region22: #{tpu_custom_call.1} parent=5 // pred_check_branch
      %127 = sbr.rel (%p125) target = $region24
    $region23: #{tpu_custom_call.1} parent=5 // pred_region
      // Predicated region
      $region25: #{tpu_custom_call.1} parent=23 // pred_check
        %p128 = pneg %p29
      $region26: #{tpu_custom_call.1} parent=23 // pred_check_branch
        %130 = sbr.rel (%p128) target = $region28
      $region27: #{tpu_custom_call.1} parent=23 // pred_region
        %s131 = smul.u32 32, %s9
        %p132 = scmp.lt.s32.totalorder %s131, 127
        %s133 = scalar_select %p132, %s131, 127
        %s134 = smul.addr %s133, 8
        %s135 = scalar_lea.vmem %s0, %s134
        %s136 = smul.u32 32, %s9
      $region28: #{tpu_custom_call.1} parent=23 // pred_fallthru
        _
    $region24: #{tpu_custom_call.1} parent=5 // pred_fallthru
      _
    %p137 = scmp.le.s32.totalorder 1, %s9
    %p138 = scmp.lt.s32.totalorder %s9, 5
    %p139 = pnand %p137, %p138
    %p140 = pneg %p139
    // Predicated region
    $region29: #{tpu_custom_call.1} parent=5 // pred_check
      _
    $region30: #{tpu_custom_call.1} parent=5 // pred_check_branch
      %142 = sbr.rel (%p139) target = $region32
    $region31: #{tpu_custom_call.1} parent=5 // pred_region
      %s143 = ssub.s32 %s9, 1
      %s144 = smul.u32 32, %s14
      %p145 = scmp.lt.s32.totalorder %s144, 127
      %s146 = scalar_select %p145, %s144, 127
      %s147 = smul.addr %s146, 8
      %s148 = scalar_lea.vmem %s0, %s147
      %p149 = pneg %p35
      %p150 = pneg %p32
      %p151 = pneg %p56
      %p152 = pneg %p53
      %p153 = pneg %p77
      %p154 = pneg %p74
      %p155 = pneg %p103
      %p156 = pneg %p100
      %s157 = smul.u32 32, %s14
      %p158 = scmp.lt.s32.totalorder %s157, 127
      %s159 = scalar_select %p158, %s157, 127
      %s160 = smul.addr %s159, 8
      %s161 = scalar_lea.vmem %s3, %s160
      %s162 = smul.u32 32, %s14
      %p163 = scmp.lt.s32.totalorder %s162, 127
      %s164 = scalar_select %p163, %s162, 127
      %s165 = smul.addr %s164, 8
      %s166 = scalar_lea.vmem %s0, %s165
      %s167 = smul.u32 32, %s14
      %s168 = smul.u32 32, %s14
      %p169 = scmp.lt.s32.totalorder %s168, 127
      %s170 = scalar_select %p169, %s168, 127
      %s171 = smul.addr %s170, 8
      %s172 = scalar_lea.vmem %s3, %s171
      %s173 = smul.u32 32, %s14
      %v174 = vld [vmem:[%s166] sm:$0xff]
      %v175 = vld [vmem:[%s166 + $0x8] sm:$0xff]
      %v176 = vld [vmem:[%s166 + $0x10] sm:$0xff]
      %v177 = vld [vmem:[%s166 + $0x18] sm:$0xff]
      %v178 = vld [vmem:[%s166 + $0x20] sm:$0xff]
      %v179 = vld [vmem:[%s166 + $0x28] sm:$0xff]
      %v180 = vld [vmem:[%s166 + $0x30] sm:$0xff]
      %v181 = vld [vmem:[%s166 + $0x38] sm:$0xff]
      %v182 = vld [vmem:[%s166 + $0x40] sm:$0xff]
      %v183 = vld [vmem:[%s166 + $0x48] sm:$0xff]
      %v184 = vld [vmem:[%s166 + $0x50] sm:$0xff]
      %v185 = vld [vmem:[%s166 + $0x58] sm:$0xff]
      %v186 = vld [vmem:[%s166 + $0x60] sm:$0xff]
      %v187 = vld [vmem:[%s166 + $0x68] sm:$0xff]
      %v188 = vld [vmem:[%s166 + $0x70] sm:$0xff]
      %v189 = vld [vmem:[%s166 + $0x78] sm:$0xff]
      %v190 = vld [vmem:[%s166 + $0x80] sm:$0xff]
      %v191 = vld [vmem:[%s166 + $0x88] sm:$0xff]
      %v192 = vld [vmem:[%s166 + $0x90] sm:$0xff]
      %v193 = vld [vmem:[%s166 + $0x98] sm:$0xff]
      %v194 = vld [vmem:[%s166 + $0xa0] sm:$0xff]
      %v195 = vld [vmem:[%s166 + $0xa8] sm:$0xff]
      %v196 = vld [vmem:[%s166 + $0xb0] sm:$0xff]
      %v197 = vld [vmem:[%s166 + $0xb8] sm:$0xff]
      %v198 = vld [vmem:[%s166 + $0xc0] sm:$0xff]
      %v199 = vld [vmem:[%s166 + $0xc8] sm:$0xff]
      %v200 = vld [vmem:[%s166 + $0xd0] sm:$0xff]
      %v201 = vld [vmem:[%s166 + $0xd8] sm:$0xff]
      %v202 = vld [vmem:[%s166 + $0xe0] sm:$0xff]
      %v203 = vld [vmem:[%s166 + $0xe8] sm:$0xff]
      %v204 = vld [vmem:[%s166 + $0xf0] sm:$0xff]
      %v205 = vld [vmem:[%s166 + $0xf8] sm:$0xff]
      %v206 = vld [vmem:[%s1] sm:$0xff]
      %v207 = vld [vmem:[%s1 + $0x8] sm:$0xff]
      %v208 = vld [vmem:[%s1 + $0x10] sm:$0xff]
      %v209 = vld [vmem:[%s1 + $0x18] sm:$0xff]
      %v210 = vld [vmem:[%s2] sm:$0x1]
      %v212 = vlaneseq
      %v213 = vshrl.u32 %v212, 7
      %v214 = vsub.s32 0, %v213
      %v215 = vrot.slane %v210, %v214
      %vm217 = vcmask 97280
      %v219 = vsel %vm217, %v174, 0
      %v222 = vsel %vm217, %v175, 0
      %v225 = vsel %vm217, %v176, 0
      %v228 = vsel %vm217, %v177, 0
      %v231 = vsel %vm217, %v178, 0
      %v234 = vsel %vm217, %v179, 0
      %v237 = vsel %vm217, %v180, 0
      %v240 = vsel %vm217, %v181, 0
      %v243 = vsel %vm217, %v182, 0
      %v246 = vsel %vm217, %v183, 0
      %v249 = vsel %vm217, %v184, 0
      %v252 = vsel %vm217, %v185, 0
      %v255 = vsel %vm217, %v186, 0
      %v258 = vsel %vm217, %v187, 0
      %v261 = vsel %vm217, %v188, 0
      %v264 = vsel %vm217, %v189, 0
      %v267 = vsel %vm217, %v190, 0
      %v270 = vsel %vm217, %v191, 0
      %v273 = vsel %vm217, %v192, 0
      %v276 = vsel %vm217, %v193, 0
      %v279 = vsel %vm217, %v194, 0
      %v282 = vsel %vm217, %v195, 0
      %v285 = vsel %vm217, %v196, 0
      %v288 = vsel %vm217, %v197, 0
      %v291 = vsel %vm217, %v198, 0
      %v294 = vsel %vm217, %v199, 0
      %v297 = vsel %vm217, %v200, 0
      %v300 = vsel %vm217, %v201, 0
      %v303 = vsel %vm217, %v202, 0
      %v306 = vsel %vm217, %v203, 0
      %v309 = vsel %vm217, %v204, 0
      %v312 = vsel %vm217, %v205, 0
      %v315 = vsel %vm217, %v206, 0
      %v318 = vsel %vm217, %v207, 0
      %v321 = vsel %vm217, %v208, 0
      %v324 = vsel %vm217, %v209, 0
      %326 = vmatprep.subr.mxu0 0.0
      %327 = vmatpush1.xpose.msra.mxu0 %v315
      %328 = vmatprep.subr.mxu0 0.0
      %329 = vmatpush1.xpose.msra.mxu0 %v318
      %330 = vmatprep.subr.mxu0 0.0
      %331 = vmatpush1.xpose.msra.mxu0 %v321
      %332 = vmatprep.subr.mxu0 0.0
      %333 = vmatpush1.xpose.msra.mxu0 %v324
      %334 = vmatprep.subr.mxu0 0.0
      %335 = vmatpush1.xpose.msra.mxu0 0.0
      %336 = vmatprep.subr.mxu0 0.0
      %337 = vmatpush1.xpose.msra.mxu0 0.0
      %338 = vmatprep.subr.mxu0 0.0
      %339 = vmatpush1.xpose.msra.mxu0 0.0
      %340 = vmatprep.subr.mxu0 0.0
      %341 = vmatpush1.xpose.msra.mxu0 0.0
      %342 = vmatprep.subr.mxu0 0.0
      %343 = vmatpush1.xpose.msra.mxu0 0.0
      %344 = vmatprep.subr.mxu0 0.0
      %345 = vmatpush1.xpose.msra.mxu0 0.0
      %346 = vmatprep.subr.mxu0 0.0
      %347 = vmatpush1.xpose.msra.mxu0 0.0
      %348 = vmatprep.subr.mxu0 0.0
      %349 = vmatpush1.xpose.msra.mxu0 0.0
      %350 = vmatprep.subr.mxu0 0.0
      %351 = vmatpush1.xpose.msra.mxu0 0.0
      %352 = vmatprep.subr.mxu0 0.0
      %353 = vmatpush1.xpose.msra.mxu0 0.0
      %354 = vmatprep.subr.mxu0 0.0
      %355 = vmatpush1.xpose.msra.mxu0 0.0
      %356 = vmatprep.subr.mxu0 0.0
      %357 = vmatpush1.xpose.msra.mxu0 0.0
      %358 = vmatprep.subr.mxu0 0.0
      %359 = vmatpush1.xpose.msra.mxu0 0.0
      %360 = vmatprep.subr.mxu0 0.0
      %361 = vmatpush1.xpose.msra.mxu0 0.0
      %362 = vmatprep.subr.mxu0 0.0
      %363 = vmatpush1.xpose.msra.mxu0 0.0
      %364 = vmatprep.subr.mxu0 0.0
      %365 = vmatpush1.xpose.msra.mxu0 0.0
      %366 = vmatprep.subr.mxu0 0.0
      %367 = vmatpush1.xpose.msra.mxu0 0.0
      %368 = vmatprep.subr.mxu0 0.0
      %369 = vmatpush1.xpose.msra.mxu0 0.0
      %370 = vmatprep.subr.mxu0 0.0
      %371 = vmatpush1.xpose.msra.mxu0 0.0
      %372 = vmatprep.subr.mxu0 0.0
      %373 = vmatpush1.xpose.msra.mxu0 0.0
      %374 = vmatprep.subr.mxu0 0.0
      %375 = vmatpush1.xpose.msra.mxu0 0.0
      %376 = vmatprep.subr.mxu0 0.0
      %377 = vmatpush1.xpose.msra.mxu0 0.0
      %378 = vmatprep.subr.mxu0 0.0
      %379 = vmatpush1.xpose.msra.mxu0 0.0
      %380 = vmatprep.subr.mxu0 0.0
      %381 = vmatpush1.xpose.msra.mxu0 0.0
      %382 = vmatprep.subr.mxu0 0.0
      %383 = vmatpush1.xpose.msra.mxu0 0.0
      %384 = vmatprep.subr.mxu0 0.0
      %385 = vmatpush1.xpose.msra.mxu0 0.0
      %386 = vmatprep.subr.mxu0 0.0
      %387 = vmatpush1.xpose.msra.mxu0 0.0
      %388 = vmatprep.subr.mxu0 0.0
      %389 = vmatpush1.xpose.msra.mxu0 0.0
      %390 = vmatprep.mubr.f32.mxu0 0.0
      %391 = vmatmul.mubr.f32.gmra.mrb[0].mxu0 %v219
      %v392 = vpop.f32.mrb[0].mxu0
      %v393 = vadd.f32 %v215, %v392
      %v394 = vpop.f32.mrb[0].mxu0
      %395 = vmatprep.mubr.f32.mxu0 0.0
      %396 = vmatmul.mubr.f32.gmra.mrb[0].mxu0 %v222
      %v397 = vpop.f32.mrb[0].mxu0
      %v398 = vadd.f32 %v215, %v397
      %v399 = vpop.f32.mrb[0].mxu0
      %400 = vmatprep.mubr.f32.mxu0 0.0
      %401 = vmatmul.mubr.f32.gmra.mrb[0].mxu0 %v225
      %v402 = vpop.f32.mrb[0].mxu0
      %v403 = vadd.f32 %v215, %v402
      %v404 = vpop.f32.mrb[0].mxu0
      %405 = vmatprep.mubr.f32.mxu0 0.0
      %406 = vmatmul.mubr.f32.gmra.mrb[0].mxu0 %v228
      %v407 = vpop.f32.mrb[0].mxu0
      %v408 = vadd.f32 %v215, %v407
      %v409 = vpop.f32.mrb[0].mxu0
      %410 = vmatprep.mubr.f32.mxu0 0.0
      %411 = vmatmul.mubr.f32.gmra.mrb[0].mxu0 %v231
      %v412 = vpop.f32.mrb[0].mxu0
      %v413 = vadd.f32 %v215, %v412
      %v414 = vpop.f32.mrb[0].mxu0
      %415 = vmatprep.mubr.f32.mxu0 0.0
      %416 = vmatmul.mubr.f32.gmra.mrb[0].mxu0 %v234
      %v417 = vpop.f32.mrb[0].mxu0
      %v418 = vadd.f32 %v215, %v417
      %v419 = vpop.f32.mrb[0].mxu0
      %420 = vmatprep.mubr.f32.mxu0 0.0
      %421 = vmatmul.mubr.f32.gmra.mrb[0].mxu0 %v237
      %v422 = vpop.f32.mrb[0].mxu0
      %v423 = vadd.f32 %v215, %v422
      %v424 = vpop.f32.mrb[0].mxu0
      %425 = vmatprep.mubr.f32.mxu0 0.0
      %426 = vmatmul.mubr.f32.gmra.mrb[0].mxu0 %v240
      %v427 = vpop.f32.mrb[0].mxu0
      %v428 = vadd.f32 %v215, %v427
      %v429 = vpop.f32.mrb[0].mxu0
      %430 = vmatprep.mubr.f32.mxu0 0.0
      %431 = vmatmul.mubr.f32.gmra.mrb[0].mxu0 %v243
      %v432 = vpop.f32.mrb[0].mxu0
      %v433 = vadd.f32 %v215, %v432
      %v434 = vpop.f32.mrb[0].mxu0
      %435 = vmatprep.mubr.f32.mxu0 0.0
      %436 = vmatmul.mubr.f32.gmra.mrb[0].mxu0 %v246
      %v437 = vpop.f32.mrb[0].mxu0
      %v438 = vadd.f32 %v215, %v437
      %v439 = vpop.f32.mrb[0].mxu0
      %440 = vmatprep.mubr.f32.mxu0 0.0
      %441 = vmatmul.mubr.f32.gmra.mrb[0].mxu0 %v249
      %v442 = vpop.f32.mrb[0].mxu0
      %v443 = vadd.f32 %v215, %v442
      %v444 = vpop.f32.mrb[0].mxu0
      %445 = vmatprep.mubr.f32.mxu0 0.0
      %446 = vmatmul.mubr.f32.gmra.mrb[0].mxu0 %v252
      %v447 = vpop.f32.mrb[0].mxu0
      %v448 = vadd.f32 %v215, %v447
      %v449 = vpop.f32.mrb[0].mxu0
      %450 = vmatprep.mubr.f32.mxu0 0.0
      %451 = vmatmul.mubr.f32.gmra.mrb[0].mxu0 %v255
      %v452 = vpop.f32.mrb[0].mxu0
      %v453 = vadd.f32 %v215, %v452
      %v454 = vpop.f32.mrb[0].mxu0
      %455 = vmatprep.mubr.f32.mxu0 0.0
      %456 = vmatmul.mubr.f32.gmra.mrb[0].mxu0 %v258
      %v457 = vpop.f32.mrb[0].mxu0
      %v458 = vadd.f32 %v215, %v457
      %v459 = vpop.f32.mrb[0].mxu0
      %460 = vmatprep.mubr.f32.mxu0 0.0
      %461 = vmatmul.mubr.f32.gmra.mrb[0].mxu0 %v261
      %v462 = vpop.f32.mrb[0].mxu0
      %v463 = vadd.f32 %v215, %v462
      %v464 = vpop.f32.mrb[0].mxu0
      %465 = vmatprep.mubr.f32.mxu0 0.0
      %466 = vmatmul.mubr.f32.gmra.mrb[0].mxu0 %v264
      %v467 = vpop.f32.mrb[0].mxu0
      %v468 = vadd.f32 %v215, %v467
      %v469 = vpop.f32.mrb[0].mxu0
      %470 = vmatprep.mubr.f32.mxu0 0.0
      %471 = vmatmul.mubr.f32.gmra.mrb[0].mxu0 %v267
      %v472 = vpop.f32.mrb[0].mxu0
      %v473 = vadd.f32 %v215, %v472
      %v474 = vpop.f32.mrb[0].mxu0
      %475 = vmatprep.mubr.f32.mxu0 0.0
      %476 = vmatmul.mubr.f32.gmra.mrb[0].mxu0 %v270
      %v477 = vpop.f32.mrb[0].mxu0
      %v478 = vadd.f32 %v215, %v477
      %v479 = vpop.f32.mrb[0].mxu0
      %480 = vmatprep.mubr.f32.mxu0 0.0
      %481 = vmatmul.mubr.f32.gmra.mrb[0].mxu0 %v273
      %v482 = vpop.f32.mrb[0].mxu0
      %v483 = vadd.f32 %v215, %v482
      %v484 = vpop.f32.mrb[0].mxu0
      %485 = vmatprep.mubr.f32.mxu0 0.0
      %486 = vmatmul.mubr.f32.gmra.mrb[0].mxu0 %v276
      %v487 = vpop.f32.mrb[0].mxu0
      %v488 = vadd.f32 %v215, %v487
      %v489 = vpop.f32.mrb[0].mxu0
      %490 = vmatprep.mubr.f32.mxu0 0.0
      %491 = vmatmul.mubr.f32.gmra.mrb[0].mxu0 %v279
      %v492 = vpop.f32.mrb[0].mxu0
      %v493 = vadd.f32 %v215, %v492
      %v494 = vpop.f32.mrb[0].mxu0
      %495 = vmatprep.mubr.f32.mxu0 0.0
      %496 = vmatmul.mubr.f32.gmra.mrb[0].mxu0 %v282
      %v497 = vpop.f32.mrb[0].mxu0
      %v498 = vadd.f32 %v215, %v497
      %v499 = vpop.f32.mrb[0].mxu0
      %500 = vmatprep.mubr.f32.mxu0 0.0
      %501 = vmatmul.mubr.f32.gmra.mrb[0].mxu0 %v285
      %v502 = vpop.f32.mrb[0].mxu0
      %v503 = vadd.f32 %v215, %v502
      %v504 = vpop.f32.mrb[0].mxu0
      %505 = vmatprep.mubr.f32.mxu0 0.0
      %506 = vmatmul.mubr.f32.gmra.mrb[0].mxu0 %v288
      %v507 = vpop.f32.mrb[0].mxu0
      %v508 = vadd.f32 %v215, %v507
      %v509 = vpop.f32.mrb[0].mxu0
      %510 = vmatprep.mubr.f32.mxu0 0.0
      %511 = vmatmul.mubr.f32.gmra.mrb[0].mxu0 %v291
      %v512 = vpop.f32.mrb[0].mxu0
      %v513 = vadd.f32 %v215, %v512
      %v514 = vpop.f32.mrb[0].mxu0
      %515 = vmatprep.mubr.f32.mxu0 0.0
      %516 = vmatmul.mubr.f32.gmra.mrb[0].mxu0 %v294
      %v517 = vpop.f32.mrb[0].mxu0
      %v518 = vadd.f32 %v215, %v517
      %v519 = vpop.f32.mrb[0].mxu0
      %520 = vmatprep.mubr.f32.mxu0 0.0
      %521 = vmatmul.mubr.f32.gmra.mrb[0].mxu0 %v297
      %v522 = vpop.f32.mrb[0].mxu0
      %v523 = vadd.f32 %v215, %v522
      %v524 = vpop.f32.mrb[0].mxu0
      %525 = vmatprep.mubr.f32.mxu0 0.0
      %526 = vmatmul.mubr.f32.gmra.mrb[0].mxu0 %v300
      %v527 = vpop.f32.mrb[0].mxu0
      %v528 = vadd.f32 %v215, %v527
      %v529 = vpop.f32.mrb[0].mxu0
      %530 = vmatprep.mubr.f32.mxu0 0.0
      %531 = vmatmul.mubr.f32.gmra.mrb[0].mxu0 %v303
      %v532 = vpop.f32.mrb[0].mxu0
      %v533 = vadd.f32 %v215, %v532
      %v534 = vpop.f32.mrb[0].mxu0
      %535 = vmatprep.mubr.f32.mxu0 0.0
      %536 = vmatmul.mubr.f32.gmra.mrb[0].mxu0 %v306
      %v537 = vpop.f32.mrb[0].mxu0
      %v538 = vadd.f32 %v215, %v537
      %v539 = vpop.f32.mrb[0].mxu0
      %540 = vmatprep.mubr.f32.mxu0 0.0
      %541 = vmatmul.mubr.f32.gmra.mrb[0].mxu0 %v309
      %v542 = vpop.f32.mrb[0].mxu0
      %v543 = vadd.f32 %v215, %v542
      %v544 = vpop.f32.mrb[0].mxu0
      %545 = vmatprep.mubr.f32.mxu0 0.0
      %546 = vmatmul.mubr.f32.gmra.mrb[0].mxu0 %v312
      %v547 = vpop.f32.mrb[0].mxu0
      %v548 = vadd.f32 %v215, %v547
      %v549 = vpop.f32.mrb[0].mxu0
      %550 = vdwg.mxu0
      %v551 = vtanh.pop %v393
      %v552 = vtanh.pop %v398
      %v553 = vtanh.pop %v403
      %v554 = vtanh.pop %v408
      %v555 = vtanh.pop %v413
      %v556 = vtanh.pop %v418
      %v557 = vtanh.pop %v423
      %v558 = vtanh.pop %v428
      %v559 = vtanh.pop %v433
      %v560 = vtanh.pop %v438
      %v561 = vtanh.pop %v443
      %v562 = vtanh.pop %v448
      %v563 = vtanh.pop %v453
      %v564 = vtanh.pop %v458
      %v565 = vtanh.pop %v463
      %v566 = vtanh.pop %v468
      %v567 = vtanh.pop %v473
      %v568 = vtanh.pop %v478
      %v569 = vtanh.pop %v483
      %v570 = vtanh.pop %v488
      %v571 = vtanh.pop %v493
      %v572 = vtanh.pop %v498
      %v573 = vtanh.pop %v503
      %v574 = vtanh.pop %v508
      %v575 = vtanh.pop %v513
      %v576 = vtanh.pop %v518
      %v577 = vtanh.pop %v523
      %v578 = vtanh.pop %v528
      %v579 = vtanh.pop %v533
      %v580 = vtanh.pop %v538
      %v581 = vtanh.pop %v543
      %v582 = vtanh.pop %v548
      %vm583 = vcmask 261120
      %584 = vst.msk [vmem:[%s172] sm:$0xff] %vm583, %v551
      %585 = vst.msk [vmem:[%s172 + $0x8] sm:$0xff] %vm583, %v552
      %586 = vst.msk [vmem:[%s172 + $0x10] sm:$0xff] %vm583, %v553
      %587 = vst.msk [vmem:[%s172 + $0x18] sm:$0xff] %vm583, %v554
      %588 = vst.msk [vmem:[%s172 + $0x20] sm:$0xff] %vm583, %v555
      %589 = vst.msk [vmem:[%s172 + $0x28] sm:$0xff] %vm583, %v556
      %590 = vst.msk [vmem:[%s172 + $0x30] sm:$0xff] %vm583, %v557
      %591 = vst.msk [vmem:[%s172 + $0x38] sm:$0xff] %vm583, %v558
      %592 = vst.msk [vmem:[%s172 + $0x40] sm:$0xff] %vm583, %v559
      %593 = vst.msk [vmem:[%s172 + $0x48] sm:$0xff] %vm583, %v560
      %594 = vst.msk [vmem:[%s172 + $0x50] sm:$0xff] %vm583, %v561
      %595 = vst.msk [vmem:[%s172 + $0x58] sm:$0xff] %vm583, %v562
      %596 = vst.msk [vmem:[%s172 + $0x60] sm:$0xff] %vm583, %v563
      %597 = vst.msk [vmem:[%s172 + $0x68] sm:$0xff] %vm583, %v564
      %598 = vst.msk [vmem:[%s172 + $0x70] sm:$0xff] %vm583, %v565
      %599 = vst.msk [vmem:[%s172 + $0x78] sm:$0xff] %vm583, %v566
      %600 = vst.msk [vmem:[%s172 + $0x80] sm:$0xff] %vm583, %v567
      %601 = vst.msk [vmem:[%s172 + $0x88] sm:$0xff] %vm583, %v568
      %602 = vst.msk [vmem:[%s172 + $0x90] sm:$0xff] %vm583, %v569
      %603 = vst.msk [vmem:[%s172 + $0x98] sm:$0xff] %vm583, %v570
      %604 = vst.msk [vmem:[%s172 + $0xa0] sm:$0xff] %vm583, %v571
      %605 = vst.msk [vmem:[%s172 + $0xa8] sm:$0xff] %vm583, %v572
      %606 = vst.msk [vmem:[%s172 + $0xb0] sm:$0xff] %vm583, %v573
      %607 = vst.msk [vmem:[%s172 + $0xb8] sm:$0xff] %vm583, %v574
      %608 = vst.msk [vmem:[%s172 + $0xc0] sm:$0xff] %vm583, %v575
      %609 = vst.msk [vmem:[%s172 + $0xc8] sm:$0xff] %vm583, %v576
      %610 = vst.msk [vmem:[%s172 + $0xd0] sm:$0xff] %vm583, %v577
      %611 = vst.msk [vmem:[%s172 + $0xd8] sm:$0xff] %vm583, %v578
      %612 = vst.msk [vmem:[%s172 + $0xe0] sm:$0xff] %vm583, %v579
      %613 = vst.msk [vmem:[%s172 + $0xe8] sm:$0xff] %vm583, %v580
      %614 = vst.msk [vmem:[%s172 + $0xf0] sm:$0xff] %vm583, %v581
      %615 = vst.msk [vmem:[%s172 + $0xf8] sm:$0xff] %vm583, %v582
      %s616 = smul.u32 32, %s14
      %p617 = scmp.lt.s32.totalorder %s616, 127
      %s618 = scalar_select %p617, %s616, 127
      %s619 = smul.addr %s618, 8
      %s620 = scalar_lea.vmem %s3, %s619
      // Predicated region
      $region33: #{tpu_custom_call.1} parent=31 // pred_check
        %p621 = pneg %p100
      $region34: #{tpu_custom_call.1} parent=31 // pred_check_branch
        %623 = sbr.rel (%p621) target = $region36
      $region35: #{tpu_custom_call.1} parent=31 // pred_region
        %s624 = smul.u32 32, %s14
      $region36: #{tpu_custom_call.1} parent=31 // pred_fallthru
        _
    $region32: #{tpu_custom_call.1} parent=5 // pred_fallthru
      _
    %p625 = scmp.le.s32.totalorder 2, %s9
    // Predicated region
    $region37: #{tpu_custom_call.1} parent=5 // pred_check
      %p626 = pneg %p625
    $region38: #{tpu_custom_call.1} parent=5 // pred_check_branch
      %628 = sbr.rel (%p626) target = $region40
    $region39: #{tpu_custom_call.1} parent=5 // pred_region
      %s629 = ssub.s32 %s9, 2
      // Predicated region
      $region41: #{tpu_custom_call.1} parent=39 // pred_check
        %p630 = pneg %p106
      $region42: #{tpu_custom_call.1} parent=39 // pred_check_branch
        %632 = sbr.rel (%p630) target = $region44
      $region43: #{tpu_custom_call.1} parent=39 // pred_region
        %s633 = smul.u32 32, %s15
        %p634 = scmp.lt.s32.totalorder %s633, 127
        %s635 = scalar_select %p634, %s633, 127
        %s636 = smul.addr %s635, 8
        %s637 = scalar_lea.vmem %s3, %s636
      $region44: #{tpu_custom_call.1} parent=39 // pred_fallthru
        _
    $region40: #{tpu_custom_call.1} parent=5 // pred_fallthru
      _
  $region6: #{tpu_custom_call.1} parent=0 // loop_footer
    %s13 = sadd.s32 1, %s9
  $region7: #{tpu_custom_call.1} parent=0 // loop_footer_branch
    %8 = sbr.rel target = $region3
  $region8: #{tpu_custom_call.1} parent=0 // loop_exit
    _

</llo_original>
